<compile_context>
chip_gen: v6e
topology: v6e:2x2x1
jax: 0.10.0
libtpu: 0.0.40
codegen_flags: <defaults>
</compile_context>

<pallas_src>
import functools

import jax
import jax.numpy as jnp
from jax import lax
from jax.experimental import pallas as pl
from jax.experimental.pallas import tpu as pltpu

TEMPERATURE = 0.01
ALPHA = 0.1
TYPE_EQUIVALENCE = "strict"


# --------------------------------------------------------------------------
# Tiling / VMEM planning
# --------------------------------------------------------------------------
def _round_up(x, m):
    return ((x + m - 1) // m) * m


def _vmem_limit_bytes():
    """Scoped-VMEM limit derived from the chip (v5e/v6e: 128 MiB, v7x: 64 MiB)."""
    try:
        cap = int(pltpu.get_tpu_info().vmem_capacity_bytes)
    except Exception:  # interpret mode / older jax: be conservative
        cap = 64 * 1024 * 1024
    return min((cap * 3) // 4, 100 * 1024 * 1024)


def _plan_tiles(n, d, feat_cols, emb_bytes, feat_bytes):
    """Pick (tq, tk, nk, cache_sim, vmem_limit) for an N x N SupCon problem."""
    vmem_limit = _vmem_limit_bytes()
    budget = int(vmem_limit * 0.6)  # headroom for Mosaic-internal scratch

    # Row tile: multiple of 8; >= 2 row blocks whenever possible so the
    # "parallel" row axis can be split across v7x's two TensorCores; 256/512
    # keep the 256-wide (v6e/v7x) and 128-wide (v5e) MXU M-extent full.
    if n <= 8:
        tq = n
    elif n >= 2048 and budget >= 48 * 1024 * 1024:
        tq = 512
    elif n >= 512:
        tq = 256
    else:
        tq = min(256, max(8, _round_up((n + 1) // 2, 8)))

    def working_set(tk, cache_blocks):
        io = 2 * (tq + tk) * d * emb_bytes              # double-buffered emb tiles
        io += 2 * (tq + tk) * feat_cols * feat_bytes    # double-buffered type tiles
        io += 2 * (tq + tk) * 8                         # labels / counts (generous)
        temps = 7 * tq * tk * 4                         # live (TQ, TK) f32 temporaries
        cache = cache_blocks * tq * tk * 4              # sim-cache scratch
        return io + temps + cache + 4 * tq * 4

    # Preferred: full-width columns -> a single pass over the similarities.
    if working_set(n, 1) <= budget:
        return tq, n, 1, True, vmem_limit

    # Otherwise stream the key/column dimension in lane-aligned tiles.
    tk = 128
    for cand in (512, 256, 128):
        if working_set(cand, 0) <= budget:
            tk = cand
            break
    nk = -(-n // tk)
    cache_sim = working_set(tk, nk) <= budget  # cache sim tiles if they still fit
    return tq, tk, nk, cache_sim, vmem_limit


# --------------------------------------------------------------------------
# Kernel bodies
# --------------------------------------------------------------------------
def _online_supcon_step(sim_fn, same, no_label, row_ids, col_ids, *,
                        n_valid, nk, cache_sim,
                        m_ref, neg_ref, pos_ref, num_ref, sim_cache,
                        mlpp_ref, inc_ref):
    """One (row-block i, phase p, col-block k) grid step of the online loss.

    Phase 0: running row-max `m` and negatives exp-sum `neg` (flash-style
             rescaling), streamed over column blocks.
    Phase 1: with the final m/neg, accumulate positive-pair count and the sum
             of per-pair log-probs; finalize on the last column block.
    """
    p = pl.program_id(1)
    k = pl.program_id(2)
    col_valid = col_ids < n_valid  # (1, TK): False on padded columns

    @pl.when(p == 0)
    def _phase0():
        @pl.when(k == 0)
        def _():
            m_ref[...] = jnp.full(m_ref.shape, -jnp.inf, jnp.float32)
            neg_ref[...] = jnp.zeros(neg_ref.shape, jnp.float32)

        sim = sim_fn()
        if cache_sim:
            sim_cache[k] = sim
        sim_m = jnp.where(col_valid, sim, -jnp.inf)
        m_prev = m_ref[...]
        m_new = jnp.maximum(m_prev, jnp.max(sim_m, axis=1, keepdims=True))
        exp_s = jnp.exp(sim_m - m_new)
        # Negatives sum taken *directly* over the masked exponentials; never
        # computed as row_sum(exp) - row_sum(same*exp) (that cancellation was
        # the source of the previous -inf loss).
        neg_blk = jnp.sum(jnp.where(same, 0.0, exp_s), axis=1, keepdims=True)
        neg_ref[...] = neg_ref[...] * jnp.exp(m_prev - m_new) + neg_blk
        m_ref[...] = m_new

    @pl.when(p == 1)
    def _phase1():
        @pl.when(k == 0)
        def _():
            pos_ref[...] = jnp.zeros(pos_ref.shape, jnp.float32)
            num_ref[...] = jnp.zeros(num_ref.shape, jnp.float32)

        sim = sim_cache[k] if cache_sim else sim_fn()
        sim_s = sim - m_ref[...]
        # torch SupCon variant: denominator_ij = neg_i + exp(sim_s_ij)
        log_prob = sim_s - jnp.log(neg_ref[...] + jnp.exp(sim_s))
        # positive pairs = same-label pairs minus the diagonal (and padding);
        # diag/validity tests use only (TQ,1)/(1,TK) iotas.
        pos = jnp.logical_and(same,
                              jnp.logical_and(col_valid, row_ids != col_ids))
        pos_ref[...] += jnp.sum(pos.astype(jnp.float32), axis=1, keepdims=True)
        num_ref[...] += jnp.sum(jnp.where(pos, log_prob, 0.0),
                                axis=1, keepdims=True)

        @pl.when(k == nk - 1)
        def _finalize():
            possum = pos_ref[...]
            include = jnp.logical_and(
                possum > 0.0,
                jnp.logical_and(jnp.logical_not(no_label), row_ids < n_valid))
            # Exact divide: it is only a (TQ, 1) vector, so the approx
            # reciprocal's error is avoidable for free.
            mean_lpp = num_ref[...] / (possum + jnp.where(include, 0.0, 1.0))
            mlpp_ref[...] = jnp.where(include, mean_lpp, 0.0)
            inc_ref[...] = include.astype(jnp.float32)


def _supcon_label_kernel(emb_row_ref, emb_col_ref, lbl_row_ref, lbl_col_ref,
                         mlpp_ref, inc_ref,
                         m_ref, neg_ref, pos_ref, num_ref, sim_cache,
                         *, inv_temp, n_valid, nk, cache_sim):
    """SupCon tile where same_label_mask[i, j] = (label_i == label_j)."""
    tq = emb_row_ref.shape[0]
    tk = emb_col_ref.shape[0]
    row_ids = pl.program_id(0) * tq + lax.broadcasted_iota(jnp.int32, (tq, 1), 0)
    col_ids = pl.program_id(2) * tk + lax.broadcasted_iota(jnp.int32, (1, tk), 1)

    def sim_fn():
        return lax.dot_general(emb_row_ref[...], emb_col_ref[...],
                               (((1,), (1,)), ((), ())),
                               preferred_element_type=jnp.float32) * inv_temp

    same = lbl_row_ref[...] == lbl_col_ref[...]    # (TQ, TK)
    no_label = lbl_row_ref[...] == -1              # (TQ, 1)
    _online_supcon_step(sim_fn, same, no_label, row_ids, col_ids,
                        n_valid=n_valid, nk=nk, cache_sim=cache_sim,
                        m_ref=m_ref, neg_ref=neg_ref, pos_ref=pos_ref,
                        num_ref=num_ref, sim_cache=sim_cache,
                        mlpp_ref=mlpp_ref, inc_ref=inc_ref)


def _supcon_type_kernel(emb_row_ref, emb_col_ref, typ_row_ref, typ_col_ref,
                        cnt_row_ref, cnt_col_ref,
                        mlpp_ref, inc_ref,
                        m_ref, neg_ref, pos_ref, num_ref, sim_cache,
                        *, inv_temp, n_valid, nk, cache_sim, strict):
    """SupCon tile where the mask comes from multi-hot type vectors."""
    tq = emb_row_ref.shape[0]
    tk = emb_col_ref.shape[0]
    row_ids = pl.program_id(0) * tq + lax.broadcasted_iota(jnp.int32, (tq, 1), 0)
    col_ids = pl.program_id(2) * tk + lax.broadcasted_iota(jnp.int32, (1, tk), 1)

    def sim_fn():
        return lax.dot_general(emb_row_ref[...], emb_col_ref[...],
                               (((1,), (1,)), ((), ())),
                               preferred_element_type=jnp.float32) * inv_temp

    # |types_i ∩ types_j| via a bf16 MXU matmul ({0,1} is exact in bf16;
    # f32 accumulation keeps the integer counts exact).
    overlap = lax.dot_general(typ_row_ref[...], typ_col_ref[...],
                              (((1,), (1,)), ((), ())),
                              preferred_element_type=jnp.float32)  # (TQ, TK)
    cnt_row = cnt_row_ref[...]   # (TQ, 1) f32, precomputed in the wrapper
    cnt_col = cnt_col_ref[...]   # (1, TK) f32, precomputed in the wrapper
    if strict:
        # identical multi-hot rows  <=>  |a ∩ b| == |a| == |b|
        same = jnp.logical_and(overlap == cnt_row, overlap == cnt_col)
    else:
        same = overlap > 0.0
    no_label = cnt_row == 0.0
    _online_supcon_step(sim_fn, same, no_label, row_ids, col_ids,
                        n_valid=n_valid, nk=nk, cache_sim=cache_sim,
                        m_ref=m_ref, neg_ref=neg_ref, pos_ref=pos_ref,
                        num_ref=num_ref, sim_cache=sim_cache,
                        mlpp_ref=mlpp_ref, inc_ref=inc_ref)


# --------------------------------------------------------------------------
# Wrappers
# --------------------------------------------------------------------------
def _finalize(mlpp, inc, temperature):
    s = jnp.sum(mlpp)
    c = jnp.sum(inc)
    # torch: returns tensor(0) when no positive pairs survive the mask.
    return jnp.where(c > 0.0, -temperature * s / jnp.maximum(c, 1.0),
                     jnp.float32(0.0))


def _supcon_call(kernel, inputs, in_specs, *, n, tq, tk, nk, cache_sim, vmem_limit):
    grid = (pl.cdiv(n, tq), 2, nk)
    cache_shape = (nk, tq, tk) if cache_sim else (1, 8, 128)
    mlpp, inc = pl.pallas_call(
        kernel,
        grid=grid,
        in_specs=in_specs,
        out_specs=[pl.BlockSpec((tq, 1), lambda i, p, k: (i, 0)),
                   pl.BlockSpec((tq, 1), lambda i, p, k: (i, 0))],
        out_shape=[jax.ShapeDtypeStruct((n, 1), jnp.float32),
                   jax.ShapeDtypeStruct((n, 1), jnp.float32)],
        scratch_shapes=[pltpu.VMEM((tq, 1), jnp.float32),   # running max
                        pltpu.VMEM((tq, 1), jnp.float32),   # negatives exp-sum
                        pltpu.VMEM((tq, 1), jnp.float32),   # positive count
                        pltpu.VMEM((tq, 1), jnp.float32),   # positive log-prob sum
                        pltpu.VMEM(cache_shape, jnp.float32)],  # sim cache
        compiler_params=pltpu.CompilerParams(
            dimension_semantics=("parallel", "arbitrary", "arbitrary"),
            vmem_limit_bytes=vmem_limit),
    )(*inputs)
    return mlpp, inc


def supcon_loss_from_labels(embs, labels, temperature=TEMPERATURE,
                            matmul_dtype=jnp.float32, tiles=None):
    """SupConLoss where same_label_mask = (labels[:, None] == labels[None, :])."""
    n, d = embs.shape
    emb_bytes = jnp.dtype(matmul_dtype).itemsize
    if tiles is None:
        tq, tk, nk, cache_sim, vmem_limit = _plan_tiles(n, d, 0, emb_bytes, 0)
    else:                                   # test hook: force a tiling
        tq, tk, cache_sim = tiles
        nk = -(-n // tk)
        vmem_limit = _vmem_limit_bytes()

    embs_c = embs.astype(matmul_dtype)
    lbl = labels.reshape(-1).astype(jnp.int32)

    # When sim tiles are cached, phase 1 never reads the column embeddings:
    # pin its block index to 0 so the column stream is not re-fetched.
    emb_col_map = ((lambda i, p, k: (k * (1 - p), 0)) if cache_sim
                   else (lambda i, p, k: (k, 0)))
    in_specs = [
        pl.BlockSpec((tq, d), lambda i, p, k: (i, 0)),   # query/row emb tile
        pl.BlockSpec((tk, d), emb_col_map),              # key/col emb tile (streamed)
        pl.BlockSpec((tq, 1), lambda i, p, k: (i, 0)),   # row labels
        pl.BlockSpec((1, tk), lambda i, p, k: (0, k)),   # col labels (lane-oriented)
    ]
    kernel = functools.partial(_supcon_label_kernel,
                               inv_temp=float(1.0 / temperature),
                               n_valid=n, nk=nk, cache_sim=cache_sim)
    mlpp, inc = _supcon_call(
        kernel, [embs_c, embs_c, lbl.reshape(n, 1), lbl.reshape(1, n)],
        in_specs, n=n, tq=tq, tk=tk, nk=nk, cache_sim=cache_sim,
        vmem_limit=vmem_limit)
    return _finalize(mlpp, inc, temperature)


def supcon_loss_from_types(embs, type_labels, temperature=TEMPERATURE,
                           type_equivalence=TYPE_EQUIVALENCE,
                           matmul_dtype=jnp.float32, tiles=None):
    """SupConLoss where the mask comes from multi-hot type labels (strict/weak)."""
    n, d = embs.shape
    t = type_labels.shape[1]
    emb_bytes = jnp.dtype(matmul_dtype).itemsize
    if tiles is None:
        tq, tk, nk, cache_sim, vmem_limit = _plan_tiles(n, d, t, emb_bytes, 2)
    else:
        tq, tk, cache_sim = tiles
        nk = -(-n // tk)
        vmem_limit = _vmem_limit_bytes()

    embs_c = embs.astype(matmul_dtype)
    types = (type_labels > 0).astype(jnp.bfloat16)           # {0,1}: exact in bf16
    counts = jnp.sum(type_labels > 0, axis=1).astype(jnp.float32)  # hoisted sum_all

    emb_col_map = ((lambda i, p, k: (k * (1 - p), 0)) if cache_sim
                   else (lambda i, p, k: (k, 0)))
    in_specs = [
        pl.BlockSpec((tq, d), lambda i, p, k: (i, 0)),
        pl.BlockSpec((tk, d), emb_col_map),
        pl.BlockSpec((tq, t), lambda i, p, k: (i, 0)),
        pl.BlockSpec((tk, t), lambda i, p, k: (k, 0)),
        pl.BlockSpec((tq, 1), lambda i, p, k: (i, 0)),
        pl.BlockSpec((1, tk), lambda i, p, k: (0, k)),
    ]
    kernel = functools.partial(_supcon_type_kernel,
                               inv_temp=float(1.0 / temperature), n_valid=n,
                               nk=nk, cache_sim=cache_sim,
                               strict=(type_equivalence != "weak"))
    mlpp, inc = _supcon_call(
        kernel,
        [embs_c, embs_c, types, types, counts.reshape(n, 1), counts.reshape(1, n)],
        in_specs, n=n, tq=tq, tk=tk, nk=nk, cache_sim=cache_sim,
        vmem_limit=vmem_limit)
    return _finalize(mlpp, inc, temperature)


def tabi_loss(query_embs, entity_embs, query_type_labels, query_entity_labels,
              entity_labels, temperature=TEMPERATURE, alpha=ALPHA,
              type_equivalence=TYPE_EQUIVALENCE, matmul_dtype=jnp.float32):
    """TABi loss: alpha * type_loss + (1 - alpha) * ent_loss."""
    ent_loss = jnp.float32(0.0)
    type_loss = jnp.float32(0.0)

    if alpha < 1.0:
        all_embs = jnp.concatenate([query_embs, entity_embs], axis=0)
        all_labels = jnp.concatenate([query_entity_labels, entity_labels],
                                     axis=0).astype(jnp.int32)
        ent_loss = supcon_loss_from_labels(all_embs, all_labels,
                                           temperature=temperature,
                                           matmul_dtype=matmul_dtype)

    if alpha > 0.0:
        type_loss = supcon_loss_from_types(query_embs, query_type_labels,
                                           temperature=temperature,
                                           type_equivalence=type_equivalence,
                                           matmul_dtype=matmul_dtype)

    total_loss = alpha * type_loss + (1.0 - alpha) * ent_loss
    return {"total_loss": total_loss, "ent_loss": ent_loss, "type_loss": type_loss}


# ---------------- pure-JAX reference (torch semantics, for sanity checks) ----
def _supcon_ref(embs, same_label_mask, no_label_mask, temperature):
    embs = embs.astype(jnp.float32)
    same = same_label_mask.astype(jnp.float32)
    nolab = no_label_mask.reshape(-1).astype(bool)
    sim = jnp.matmul(embs, embs.T, precision=jax.lax.Precision.HIGHEST) / temperature
    sim = sim - jnp.max(sim, axis=1, keepdims=True)
    negs = jnp.exp(sim) * (1.0 - same)
    denom = negs.sum(axis=1, keepdims=True) + jnp.exp(sim)
    log_prob = sim - jnp.log(denom)
    n = same.shape[0]
    pos = same * (1.0 - jnp.eye(n, dtype=jnp.float32))
    pos_sum = pos.sum(axis=1)
    include = (pos_sum != 0) & (~nolab)
    mean_lpp = (pos * log_prob).sum(axis=1) / (pos_sum + (~include).astype(jnp.float32))
    cnt = include.sum()
    return jnp.where(cnt > 0,
                     -temperature * jnp.sum(jnp.where(include, mean_lpp, 0.0))
                     / jnp.maximum(cnt, 1), 0.0)


if __name__ == "__main__":
    key = jax.random.PRNGKey(0)
    k1, k2, k3, k4, k5, k6, k7, k8 = jax.random.split(key, 8)

    # ---------------- small end-to-end TABi check ---------------------------
    num_queries, num_entities, hidden, num_types = 8, 8, 32, 4
    query_embs = jax.random.normal(k1, (num_queries, hidden), dtype=jnp.float32)
    entity_embs = jax.random.normal(k2, (num_entities, hidden), dtype=jnp.float32)
    query_embs = query_embs / jnp.linalg.norm(query_embs, axis=1, keepdims=True)
    entity_embs = entity_embs / jnp.linalg.norm(entity_embs, axis=1, keepdims=True)

    query_type_labels = jax.random.bernoulli(k3, 0.4, (num_queries, num_types)).astype(jnp.float32)
    query_type_labels = query_type_labels.at[3].set(0.0)    # a query with no type
    entity_labels = jnp.arange(num_entities, dtype=jnp.int32)
    query_entity_labels = jax.random.randint(k4, (num_queries,), 0, num_entities, dtype=jnp.int32)
    query_entity_labels = query_entity_labels.at[5].set(-1)  # a query with no gold entity

    all_embs = jnp.concatenate([query_embs, entity_embs], axis=0)
    all_labels = jnp.concatenate([query_entity_labels, entity_labels]).reshape(-1, 1)
    ent_ref = _supcon_ref(all_embs, all_labels == all_labels.T, all_labels == -1, TEMPERATURE)
    type_same = jnp.all(query_type_labels[:, None, :] == query_type_labels[None, :, :], axis=-1)
    type_ref = _supcon_ref(query_embs, type_same, query_type_labels.sum(1) == 0, TEMPERATURE)
    total_ref = ALPHA * type_ref + (1.0 - ALPHA) * ent_ref

    out = tabi_loss(query_embs, entity_embs, query_type_labels, query_entity_labels,
                    entity_labels)                                  # f32 path (default)
    out = jax.tree_util.tree_map(jax.block_until_ready, out)
    assert jnp.allclose(out["ent_loss"], ent_ref, rtol=5e-2, atol=1e-2), (out["ent_loss"], ent_ref)
    assert jnp.allclose(out["type_loss"], type_ref, rtol=5e-2, atol=1e-2), (out["type_loss"], type_ref)
    assert jnp.allclose(out["total_loss"], total_ref, rtol=5e-2, atol=1e-2), (out["total_loss"], total_ref)

    # Fast bf16 path: 1/T = 100 amplifies bf16 rounding, so looser tolerance.
    out_bf16 = tabi_loss(query_embs, entity_embs, query_type_labels,
                         query_entity_labels, entity_labels, matmul_dtype=jnp.bfloat16)
    out_bf16 = jax.tree_util.tree_map(jax.block_until_ready, out_bf16)
    assert jnp.allclose(out_bf16["total_loss"], total_ref, rtol=1e-1, atol=2e-2), (
        out_bf16["total_loss"], total_ref)

    # -------- medium check: exercises the streamed-column (flash-style) path --
    nq, ne, hid, nty = 250, 70, 32, 6
    q2 = jax.random.normal(k5, (nq, hid), dtype=jnp.float32)
    e2 = jax.random.normal(k6, (ne, hid), dtype=jnp.float32)
    q2 = q2 / jnp.linalg.norm(q2, axis=1, keepdims=True)
    e2 = e2 / jnp.linalg.norm(e2, axis=1, keepdims=True)
    qt2 = jax.random.bernoulli(k7, 0.3, (nq, nty)).astype(jnp.float32)
    el2 = jnp.arange(ne, dtype=jnp.int32)
    qel2 = jax.random.randint(k8, (nq,), 0, ne, dtype=jnp.int32)

    a_embs = jnp.concatenate([q2, e2], axis=0)                    # N = 320
    a_lbl = jnp.concatenate([qel2, el2]).reshape(-1, 1)
    ent_ref2 = _supcon_ref(a_embs, a_lbl == a_lbl.T, a_lbl == -1, TEMPERATURE)
    type_same2 = jnp.all(qt2[:, None, :] == qt2[None, :, :], axis=-1)
    type_ref2 = _supcon_ref(q2, type_same2, qt2.sum(1) == 0, TEMPERATURE)

    # column streaming + cached sim tiles (single matmul pass, dynamic cache idx)
    ent2 = supcon_loss_from_labels(a_embs, jnp.concatenate([qel2, el2]),
                                   tiles=(128, 128, True))
    # column streaming with sim recompute in phase 1 (the unbounded-N path)
    typ2 = supcon_loss_from_types(q2, qt2, tiles=(128, 128, False))
    ent2 = jax.block_until_ready(ent2)
    typ2 = jax.block_until_ready(typ2)
    assert jnp.allclose(ent2, ent_ref2, rtol=5e-2, atol=1e-2), (ent2, ent_ref2)
    assert jnp.allclose(typ2, type_ref2, rtol=5e-2, atol=1e-2), (typ2, type_ref2)

    print("KERNEL_OK")
</pallas_src>

<mosaic_0001>
module attributes {stable_mosaic.version = 11 : i64} {
  func.func @_supcon_label_kernel(%arg0: i32, %arg1: i32, %arg2: i32, %arg3: memref<8x32xf32, #tpu.memory_space<vmem>>, %arg4: memref<16x32xf32, #tpu.memory_space<vmem>>, %arg5: memref<8x1xi32, #tpu.memory_space<vmem>>, %arg6: memref<1x16xi32, #tpu.memory_space<vmem>>, %arg7: memref<8x1xf32, #tpu.memory_space<vmem>>, %arg8: memref<8x1xf32, #tpu.memory_space<vmem>>, %arg9: memref<8x1xf32, #tpu.memory_space<vmem>>, %arg10: memref<8x1xf32, #tpu.memory_space<vmem>>, %arg11: memref<8x1xf32, #tpu.memory_space<vmem>>, %arg12: memref<8x1xf32, #tpu.memory_space<vmem>>, %arg13: memref<1x8x16xf32, #tpu.memory_space<vmem>>) attributes {dimension_semantics = [#tpu.dimension_semantics<parallel>, #tpu.dimension_semantics<arbitrary>, #tpu.dimension_semantics<arbitrary>], iteration_bounds = array<i64: 2, 2, 1>, scalar_prefetch = 0 : i64, scratch_operands = 5 : i64, tpu.core_type = #tpu.core_type<tc>, window_params = [{transform_indices = @transform_0, window_bounds = array<i64: 8, 32>}, {transform_indices = @transform_1, window_bounds = array<i64: 16, 32>}, {transform_indices = @transform_2, window_bounds = array<i64: 8, 1>}, {transform_indices = @transform_3, window_bounds = array<i64: 1, 16>}, {transform_indices = @transform_4, window_bounds = array<i64: 8, 1>}, {transform_indices = @transform_5, window_bounds = array<i64: 8, 1>}]} {
    %c8_i32 = arith.constant 8 : i32
    %0 = arith.muli %arg0, %c8_i32 : i32
    %1 = tpu.iota {dimensions = array<i32: 0>} : vector<8x1xi32>
    %2 = vector.broadcast %0 : i32 to vector<8x1xi32>
    %3 = arith.addi %2, %1 : vector<8x1xi32>
    %c16_i32 = arith.constant 16 : i32
    %4 = arith.muli %arg2, %c16_i32 : i32
    %5 = tpu.iota {dimensions = array<i32: 1>} : vector<1x16xi32>
    %6 = vector.broadcast %4 : i32 to vector<1x16xi32>
    %7 = arith.addi %6, %5 : vector<1x16xi32>
    %c0 = arith.constant 0 : index
    %c0_0 = arith.constant 0 : index
    %8 = vector.load %arg5[%c0, %c0_0] : memref<8x1xi32, #tpu.memory_space<vmem>>, vector<8x1xi32>
    %c0_1 = arith.constant 0 : index
    %c0_2 = arith.constant 0 : index
    %9 = vector.load %arg6[%c0_1, %c0_2] : memref<1x16xi32, #tpu.memory_space<vmem>>, vector<1x16xi32>
    %10 = vector.broadcast %8 : vector<8x1xi32> to vector<8x16xi32>
    %11 = vector.broadcast %9 : vector<1x16xi32> to vector<8x16xi32>
    %12 = arith.cmpi eq, %10, %11 : vector<8x16xi32>
    %c0_3 = arith.constant 0 : index
    %c0_4 = arith.constant 0 : index
    %13 = vector.load %arg5[%c0_3, %c0_4] : memref<8x1xi32, #tpu.memory_space<vmem>>, vector<8x1xi32>
    %c-1_i32 = arith.constant -1 : i32
    %14 = vector.broadcast %c-1_i32 : i32 to vector<8x1xi32>
    %15 = arith.cmpi eq, %13, %14 : vector<8x1xi32>
    %c16_i32_5 = arith.constant 16 : i32
    %16 = vector.broadcast %c16_i32_5 : i32 to vector<1x16xi32>
    %17 = arith.cmpi slt, %7, %16 : vector<1x16xi32>
    %c0_i32 = arith.constant 0 : i32
    %18 = arith.cmpi eq, %arg1, %c0_i32 : i32
    %19 = arith.extui %18 : i1 to i32
    %c0_i32_6 = arith.constant 0 : i32
    %20 = arith.cmpi ne, %19, %c0_i32_6 : i32
    scf.if %20 {
      %c0_i32_8 = arith.constant 0 : i32
      %24 = arith.cmpi eq, %arg2, %c0_i32_8 : i32
      %25 = arith.extui %24 : i1 to i32
      %c0_i32_9 = arith.constant 0 : i32
      %26 = arith.cmpi ne, %25, %c0_i32_9 : i32
      scf.if %26 {
        %cst_29 = arith.constant 0xFF800000 : f32
        %58 = vector.broadcast %cst_29 : f32 to vector<8x1xf32>
        %c0_30 = arith.constant 0 : index
        %c0_31 = arith.constant 0 : index
        %59 = vector.load %arg9[%c0_30, %c0_31] : memref<8x1xf32, #tpu.memory_space<vmem>>, vector<8x1xf32>
        tpu.vector_store %arg9[%c0_30, %c0_31], %58 {strides = array<i32>} : memref<8x1xf32, #tpu.memory_space<vmem>>, vector<8x1xf32>,
        %cst_32 = arith.constant 0.000000e+00 : f32
        %60 = vector.broadcast %cst_32 : f32 to vector<8x1xf32>
        %c0_33 = arith.constant 0 : index
        %c0_34 = arith.constant 0 : index
        %61 = vector.load %arg10[%c0_33, %c0_34] : memref<8x1xf32, #tpu.memory_space<vmem>>, vector<8x1xf32>
        tpu.vector_store %arg10[%c0_33, %c0_34], %60 {strides = array<i32>} : memref<8x1xf32, #tpu.memory_space<vmem>>, vector<8x1xf32>,
      } else {
      }
      %c0_10 = arith.constant 0 : index
      %c0_11 = arith.constant 0 : index
      %27 = vector.load %arg3[%c0_10, %c0_11] : memref<8x32xf32, #tpu.memory_space<vmem>>, vector<8x32xf32>
      %c0_12 = arith.constant 0 : index
      %c0_13 = arith.constant 0 : index
      %28 = vector.load %arg4[%c0_12, %c0_13] : memref<16x32xf32, #tpu.memory_space<vmem>>, vector<16x32xf32>
      %cst = arith.constant dense<0.000000e+00> : vector<8x16xf32>
      %29 = tpu.matmul %27, %28, %cst {dimension_numbers = #tpu.dot_dimension_numbers<[1], [1], [0], [0], [0, 0, 1, 0], [], []>} : vector<8x32xf32>, vector<16x32xf32>, vector<8x16xf32> -> vector<8x16xf32>
      %cst_14 = arith.constant 1.000000e+02 : f32
      %30 = vector.broadcast %cst_14 : f32 to vector<8x16xf32>
      %31 = arith.mulf %29, %30 : vector<8x16xf32>
      %32 = arith.index_cast %arg2 : i32 to index
      %c0_15 = arith.constant 0 : index
      %c0_16 = arith.constant 0 : index
      %33 = vector.load %arg13[%32, %c0_15, %c0_16] : memref<1x8x16xf32, #tpu.memory_space<vmem>>, vector<1x8x16xf32>
      %34 = vector.shape_cast %33 : vector<1x8x16xf32> to vector<8x16xf32>
      %35 = vector.shape_cast %31 : vector<8x16xf32> to vector<1x8x16xf32>
      tpu.vector_store %arg13[%32, %c0_15, %c0_16], %35 {strides = array<i32>} : memref<1x8x16xf32, #tpu.memory_space<vmem>>, vector<1x8x16xf32>,
      %cst_17 = arith.constant 0xFF800000 : f32
      %36 = vector.shape_cast %17 : vector<1x16xi1> to vector<1x16xi1>
      %37 = vector.broadcast %36 : vector<1x16xi1> to vector<8x16xi1>
      %38 = vector.broadcast %cst_17 : f32 to vector<8x16xf32>
      %39 = arith.select %37, %31, %38 : vector<8x16xi1>, vector<8x16xf32>
      %c0_18 = arith.constant 0 : index
      %c0_19 = arith.constant 0 : index
      %40 = vector.load %arg9[%c0_18, %c0_19] : memref<8x1xf32, #tpu.memory_space<vmem>>, vector<8x1xf32>
      %cst_20 = arith.constant dense<0xFF800000> : vector<8xf32>
      %41 = vector.multi_reduction <maximumf>, %39, %cst_20 [1] : vector<8x16xf32> to vector<8xf32>
      %42 = vector.shape_cast %41 : vector<8xf32> to vector<8x1xf32>
      %43 = arith.maximumf %40, %42 : vector<8x1xf32>
      %44 = vector.broadcast %43 : vector<8x1xf32> to vector<8x16xf32>
      %45 = arith.subf %39, %44 : vector<8x16xf32>
      %46 = math.exp %45 : vector<8x16xf32>
      %cst_21 = arith.constant 0.000000e+00 : f32
      %47 = vector.broadcast %cst_21 : f32 to vector<8x16xf32>
      %48 = arith.select %12, %47, %46 : vector<8x16xi1>, vector<8x16xf32>
      %cst_22 = arith.constant dense<0.000000e+00> : vector<8xf32>
      %49 = vector.multi_reduction <add>, %48, %cst_22 [1] : vector<8x16xf32> to vector<8xf32>
      %50 = vector.shape_cast %49 : vector<8xf32> to vector<8x1xf32>
      %c0_23 = arith.constant 0 : index
      %c0_24 = arith.constant 0 : index
      %51 = vector.load %arg10[%c0_23, %c0_24] : memref<8x1xf32, #tpu.memory_space<vmem>>, vector<8x1xf32>
      %52 = arith.subf %40, %43 : vector<8x1xf32>
      %53 = math.exp %52 : vector<8x1xf32>
      %54 = arith.mulf %51, %53 : vector<8x1xf32>
      %55 = arith.addf %54, %50 : vector<8x1xf32>
      %c0_25 = arith.constant 0 : index
      %c0_26 = arith.constant 0 : index
      %56 = vector.load %arg10[%c0_25, %c0_26] : memref<8x1xf32, #tpu.memory_space<vmem>>, vector<8x1xf32>
      tpu.vector_store %arg10[%c0_25, %c0_26], %55 {strides = array<i32>} : memref<8x1xf32, #tpu.memory_space<vmem>>, vector<8x1xf32>,
      %c0_27 = arith.constant 0 : index
      %c0_28 = arith.constant 0 : index
      %57 = vector.load %arg9[%c0_27, %c0_28] : memref<8x1xf32, #tpu.memory_space<vmem>>, vector<8x1xf32>
      tpu.vector_store %arg9[%c0_27, %c0_28], %43 {strides = array<i32>} : memref<8x1xf32, #tpu.memory_space<vmem>>, vector<8x1xf32>,
    } else {
    }
    %c1_i32 = arith.constant 1 : i32
    %21 = arith.cmpi eq, %arg1, %c1_i32 : i32
    %22 = arith.extui %21 : i1 to i32
    %c0_i32_7 = arith.constant 0 : i32
    %23 = arith.cmpi ne, %22, %c0_i32_7 : i32
    scf.if %23 {
      %c0_i32_8 = arith.constant 0 : i32
      %24 = arith.cmpi eq, %arg2, %c0_i32_8 : i32
      %25 = arith.extui %24 : i1 to i32
      %c0_i32_9 = arith.constant 0 : i32
      %26 = arith.cmpi ne, %25, %c0_i32_9 : i32
      scf.if %26 {
        %cst_28 = arith.constant 0.000000e+00 : f32
        %62 = vector.broadcast %cst_28 : f32 to vector<8x1xf32>
        %c0_29 = arith.constant 0 : index
        %c0_30 = arith.constant 0 : index
        %63 = vector.load %arg11[%c0_29, %c0_30] : memref<8x1xf32, #tpu.memory_space<vmem>>, vector<8x1xf32>
        tpu.vector_store %arg11[%c0_29, %c0_30], %62 {strides = array<i32>} : memref<8x1xf32, #tpu.memory_space<vmem>>, vector<8x1xf32>,
        %cst_31 = arith.constant 0.000000e+00 : f32
        %64 = vector.broadcast %cst_31 : f32 to vector<8x1xf32>
        %c0_32 = arith.constant 0 : index
        %c0_33 = arith.constant 0 : index
        %65 = vector.load %arg12[%c0_32, %c0_33] : memref<8x1xf32, #tpu.memory_space<vmem>>, vector<8x1xf32>
        tpu.vector_store %arg12[%c0_32, %c0_33], %64 {strides = array<i32>} : memref<8x1xf32, #tpu.memory_space<vmem>>, vector<8x1xf32>,
      } else {
      }
      %27 = arith.index_cast %arg2 : i32 to index
      %c0_10 = arith.constant 0 : index
      %c0_11 = arith.constant 0 : index
      %28 = vector.load %arg13[%27, %c0_10, %c0_11] : memref<1x8x16xf32, #tpu.memory_space<vmem>>, vector<1x8x16xf32>
      %29 = vector.shape_cast %28 : vector<1x8x16xf32> to vector<8x16xf32>
      %c0_12 = arith.constant 0 : index
      %c0_13 = arith.constant 0 : index
      %30 = vector.load %arg9[%c0_12, %c0_13] : memref<8x1xf32, #tpu.memory_space<vmem>>, vector<8x1xf32>
      %31 = vector.broadcast %30 : vector<8x1xf32> to vector<8x16xf32>
      %32 = arith.subf %29, %31 : vector<8x16xf32>
      %c0_14 = arith.constant 0 : index
      %c0_15 = arith.constant 0 : index
      %33 = vector.load %arg10[%c0_14, %c0_15] : memref<8x1xf32, #tpu.memory_space<vmem>>, vector<8x1xf32>
      %34 = math.exp %32 : vector<8x16xf32>
      %35 = vector.broadcast %33 : vector<8x1xf32> to vector<8x16xf32>
      %36 = arith.addf %35, %34 : vector<8x16xf32>
      %37 = math.log %36 : vector<8x16xf32>
      %38 = arith.subf %32, %37 : vector<8x16xf32>
      %39 = vector.broadcast %3 : vector<8x1xi32> to vector<8x16xi32>
      %40 = vector.broadcast %7 : vector<1x16xi32> to vector<8x16xi32>
      %41 = arith.cmpi ne, %39, %40 : vector<8x16xi32>
      %42 = vector.broadcast %17 : vector<1x16xi1> to vector<8x16xi1>
      %43 = arith.andi %42, %41 : vector<8x16xi1>
      %44 = arith.andi %12, %43 : vector<8x16xi1>
      %c0_16 = arith.constant 0 : index
      %c0_17 = arith.constant 0 : index
      %45 = vector.load %arg11[%c0_16, %c0_17] : memref<8x1xf32, #tpu.memory_space<vmem>>, vector<8x1xf32>
      %46 = arith.extui %44 : vector<8x16xi1> to vector<8x16xi32>
      %47 = arith.sitofp %46 : vector<8x16xi32> to vector<8x16xf32>
      %cst = arith.constant dense<0.000000e+00> : vector<8xf32>
      %48 = vector.multi_reduction <add>, %47, %cst [1] : vector<8x16xf32> to vector<8xf32>
      %49 = vector.shape_cast %48 : vector<8xf32> to vector<8x1xf32>
      %50 = arith.addf %45, %49 : vector<8x1xf32>
      %c0_18 = arith.constant 0 : index
      %c0_19 = arith.constant 0 : index
      %51 = vector.load %arg11[%c0_18, %c0_19] : memref<8x1xf32, #tpu.memory_space<vmem>>, vector<8x1xf32>
      tpu.vector_store %arg11[%c0_18, %c0_19], %50 {strides = array<i32>} : memref<8x1xf32, #tpu.memory_space<vmem>>, vector<8x1xf32>,
      %c0_20 = arith.constant 0 : index
      %c0_21 = arith.constant 0 : index
      %52 = vector.load %arg12[%c0_20, %c0_21] : memref<8x1xf32, #tpu.memory_space<vmem>>, vector<8x1xf32>
      %cst_22 = arith.constant 0.000000e+00 : f32
      %53 = vector.broadcast %cst_22 : f32 to vector<8x16xf32>
      %54 = arith.select %44, %38, %53 : vector<8x16xi1>, vector<8x16xf32>
      %cst_23 = arith.constant dense<0.000000e+00> : vector<8xf32>
      %55 = vector.multi_reduction <add>, %54, %cst_23 [1] : vector<8x16xf32> to vector<8xf32>
      %56 = vector.shape_cast %55 : vector<8xf32> to vector<8x1xf32>
      %57 = arith.addf %52, %56 : vector<8x1xf32>
      %c0_24 = arith.constant 0 : index
      %c0_25 = arith.constant 0 : index
      %58 = vector.load %arg12[%c0_24, %c0_25] : memref<8x1xf32, #tpu.memory_space<vmem>>, vector<8x1xf32>
      tpu.vector_store %arg12[%c0_24, %c0_25], %57 {strides = array<i32>} : memref<8x1xf32, #tpu.memory_space<vmem>>, vector<8x1xf32>,
      %c0_i32_26 = arith.constant 0 : i32
      %59 = arith.cmpi eq, %arg2, %c0_i32_26 : i32
      %60 = arith.extui %59 : i1 to i32
      %c0_i32_27 = arith.constant 0 : i32
      %61 = arith.cmpi ne, %60, %c0_i32_27 : i32
      scf.if %61 {
        %c0_28 = arith.constant 0 : index
        %c0_29 = arith.constant 0 : index
        %62 = vector.load %arg11[%c0_28, %c0_29] : memref<8x1xf32, #tpu.memory_space<vmem>>, vector<8x1xf32>
        %cst_30 = arith.constant 0.000000e+00 : f32
        %63 = vector.broadcast %cst_30 : f32 to vector<8x1xf32>
        %64 = arith.cmpf ogt, %62, %63 : vector<8x1xf32>
        %cst_31 = arith.constant dense<true> : vector<8x1xi1>
        %65 = arith.xori %15, %cst_31 : vector<8x1xi1>
        %c16_i32_32 = arith.constant 16 : i32
        %66 = vector.broadcast %c16_i32_32 : i32 to vector<8x1xi32>
        %67 = arith.cmpi slt, %3, %66 : vector<8x1xi32>
        %68 = arith.andi %65, %67 : vector<8x1xi1>
        %69 = arith.andi %64, %68 : vector<8x1xi1>
        %c0_33 = arith.constant 0 : index
        %c0_34 = arith.constant 0 : index
        %70 = vector.load %arg12[%c0_33, %c0_34] : memref<8x1xf32, #tpu.memory_space<vmem>>, vector<8x1xf32>
        %cst_35 = arith.constant 0.000000e+00 : f32
        %cst_36 = arith.constant 1.000000e+00 : f32
        %71 = vector.broadcast %cst_35 : f32 to vector<8x1xf32>
        %72 = vector.broadcast %cst_36 : f32 to vector<8x1xf32>
        %73 = arith.select %69, %71, %72 : vector<8x1xi1>, vector<8x1xf32>
        %74 = arith.addf %62, %73 : vector<8x1xf32>
        %75 = arith.divf %70, %74 : vector<8x1xf32>
        %cst_37 = arith.constant 0.000000e+00 : f32
        %76 = vector.broadcast %cst_37 : f32 to vector<8x1xf32>
        %77 = arith.select %69, %75, %76 : vector<8x1xi1>, vector<8x1xf32>
        %c0_38 = arith.constant 0 : index
        %c0_39 = arith.constant 0 : index
        %78 = vector.load %arg7[%c0_38, %c0_39] : memref<8x1xf32, #tpu.memory_space<vmem>>, vector<8x1xf32>
        tpu.vector_store %arg7[%c0_38, %c0_39], %77 {strides = array<i32>} : memref<8x1xf32, #tpu.memory_space<vmem>>, vector<8x1xf32>,
        %79 = arith.extui %69 : vector<8x1xi1> to vector<8x1xi32>
        %80 = arith.sitofp %79 : vector<8x1xi32> to vector<8x1xf32>
        %c0_40 = arith.constant 0 : index
        %c0_41 = arith.constant 0 : index
        %81 = vector.load %arg8[%c0_40, %c0_41] : memref<8x1xf32, #tpu.memory_space<vmem>>, vector<8x1xf32>
        tpu.vector_store %arg8[%c0_40, %c0_41], %80 {strides = array<i32>} : memref<8x1xf32, #tpu.memory_space<vmem>>, vector<8x1xf32>,
      } else {
      }
    } else {
    }
    return
  }
  func.func @transform_0(%arg0: i32, %arg1: i32, %arg2: i32) -> (i32, i32) {
    %c0_i32 = arith.constant 0 : i32
    %c0_i32_0 = arith.constant 0 : i32
    return %arg0, %c0_i32 : i32, i32
  }
  func.func @transform_1(%arg0: i32, %arg1: i32, %arg2: i32) -> (i32, i32) {
    %c1_i32 = arith.constant 1 : i32
    %0 = arith.subi %c1_i32, %arg1 : i32
    %1 = arith.muli %arg2, %0 : i32
    %c0_i32 = arith.constant 0 : i32
    %c0_i32_0 = arith.constant 0 : i32
    return %1, %c0_i32 : i32, i32
  }
  func.func @transform_2(%arg0: i32, %arg1: i32, %arg2: i32) -> (i32, i32) {
    %c0_i32 = arith.constant 0 : i32
    %c0_i32_0 = arith.constant 0 : i32
    return %arg0, %c0_i32 : i32, i32
  }
  func.func @transform_3(%arg0: i32, %arg1: i32, %arg2: i32) -> (i32, i32) {
    %c0_i32 = arith.constant 0 : i32
    %c0_i32_0 = arith.constant 0 : i32
    return %c0_i32, %arg2 : i32, i32
  }
  func.func @transform_4(%arg0: i32, %arg1: i32, %arg2: i32) -> (i32, i32) {
    %c0_i32 = arith.constant 0 : i32
    %c0_i32_0 = arith.constant 0 : i32
    return %arg0, %c0_i32 : i32, i32
  }
  func.func @transform_5(%arg0: i32, %arg1: i32, %arg2: i32) -> (i32, i32) {
    %c0_i32 = arith.constant 0 : i32
    %c0_i32_0 = arith.constant 0 : i32
    return %arg0, %c0_i32 : i32, i32
  }
}

</mosaic_0001>

<llo_original>
// kernel: tpu_custom_call.1
$region0: #{tpu_custom_call.1}
  #allocation0 [shape = 'u32[]', space=smem, size = 0x4, offset = 0x4, fixed_abs, tag = 'smem constant byte address 0x4 - core index']
  #allocation1 [shape = 'u32[144,128]{1,0:T(1,128)}', space=vmem, size = 0x12000, scoped, tag = 'internal scratch']
  #allocation2 [shape = 'f32[8,1]{1,0:T(8,128)}', space=vmem, size = 0x1000, scoped, tag = 'scratch operand']
  #allocation3 [shape = 'f32[8,1]{1,0:T(8,128)}', space=vmem, size = 0x1000, scoped, tag = 'scratch operand']
  #allocation4 [shape = 'f32[8,1]{1,0:T(8,128)}', space=vmem, size = 0x1000, scoped, tag = 'scratch operand']
  #allocation5 [shape = 'f32[8,1]{1,0:T(8,128)}', space=vmem, size = 0x1000, scoped, tag = 'scratch operand']
  #allocation6 [shape = 'f32[1,8,16]{2,1,0:T(8,128)}', space=vmem, size = 0x1000, scoped, tag = 'scratch operand']
  %s0 = inlined_call_operand.vmem [shape: f32[16,32], index: 0, kind: input, shape index: {}]
  %s1 = inlined_call_operand.hbm [shape: f32[16,32], index: 1, kind: input, shape index: {}]
  %s2 = inlined_call_operand.vmem [shape: s32[16,1], index: 2, kind: input, shape index: {}]
  %s3 = inlined_call_operand.vmem [shape: s32[1,16], index: 3, kind: input, shape index: {}]
  %s4 = inlined_call_operand.vmem [shape: f32[16,1], index: 4, kind: output, shape index: {0}]
  %s5 = inlined_call_operand.vmem [shape: f32[16,1], index: 5, kind: output, shape index: {1}]
  %6 = xla_tuple %s4, %s5
  %s7 = sld [smem:[#allocation0]]
  $region81: #{tpu_custom_call.1} parent=0
    _
  %s9 = ssub.s32 1, %s7
  %s10 = scalar_select 0, %s9, %s7
  $region1: #{tpu_custom_call.1} parent=0
    #allocation7 [shape = 'u8[16384]{0}', space=vmem, size = 0x4000, scoped, tag = 'input window, operand 1']
    #allocation8 [shape = 's32[2]{0}', space=sflag, size = 0x8, scoped, tag = 'scoped memory for tpu_custom_call.1']
    %11 = vsyncpa [#allocation8], 0
    %s12 = scalar_lea.sflag [#allocation8], 1
    %13 = vsyncpa %s12, 0
    loop: start=0, step=1, limit=6
    $region2: #{tpu_custom_call.1} parent=1 // loop_pre_header
      _
    $region3: #{tpu_custom_call.1} parent=1 // loop_header
      %s15 = sphi 0, %s19
      %p16 = scmp.ge.s32.totalorder %s15, 6
      %s22 = sphi 0, %s41
      %s23 = sphi 0, %s37
      %s24 = sphi 0, %s33
      %s25 = sphi 0, %s22
      %s26 = sphi 0, %s23
      %s27 = sphi 0, %s24
      %s28 = sphi 0, %s25
      %s29 = sphi 0, %s26
      %s30 = sphi 0, %s27
      %s44 = sphi 0, %s46
      %s47 = sphi 0, %s44
      %s48 = sphi 0, %s47
      %s64 = sphi 0, %s48
      %s74 = sphi 0, %s76
      %s77 = sphi 0, %s74
      %s78 = sphi 0, %s77
      %s94 = sphi 0, %s78
      %s100 = sphi 0, %s102
      %s103 = sphi 0, %s100
      %s104 = sphi 0, %s103
      %s120 = sphi 0, %s104
      %s126 = sphi 0, %s128
      %s129 = sphi 0, %s126
      %s130 = sphi 0, %s129
      %s146 = sphi 0, %s130
      %s152 = sphi 0, %s154
      %s155 = sphi 0, %s152
      %s156 = sphi 0, %s155
      %s172 = sphi 0, %s156
      %s178 = sphi 0, %s180
      %s181 = sphi 0, %s178
      %s182 = sphi 0, %s181
      %s198 = sphi 0, %s182
    $region4: #{tpu_custom_call.1} parent=1 // loop_header_branch
      %18 = sbr.rel (%p16) target = $region8
    $region5: #{tpu_custom_call.1} parent=1 // loop_body
      %s20 = ssub.s32 %s15, 1
      %s21 = ssub.s32 %s15, 2
      %s31 = sadd.s32 1, %s24
      %p32 = scmp.ge.s32.totalorder %s31, 1
      %s33 = scalar_select %p32, 0, %s31
      %s34 = sadd.s32 1, %s23
      %s35 = scalar_select %p32, %s34, %s23
      %p36 = scmp.ge.s32.totalorder %s35, 2
      %s37 = scalar_select %p36, 0, %s35
      %s38 = sadd.s32 1, %s22
      %s39 = scalar_select %p36, %s38, %s22
      %p40 = scmp.ge.s32.totalorder %s39, 2
      %s41 = scalar_select %p40, 0, %s39
      %s42 = ssub.s32 %s22, %s41
      %p43 = scmp.eq.s32.totalorder %s42, 0
      %s45 = sadd.s32 %s44, 1
      %s46 = scalar_select %p43, %s44, %s45
      %p49 = pneg %p43
      %p50 = scmp.eq.s32.totalorder %s15, 3
      %p51 = por %p49, %p50
      %p52 = scmp.ne.s32.totalorder %s44, %s47
      %p53 = scmp.eq.s32.totalorder %s15, 0
      %p54 = por %p52, %p53
      %p55 = scmp.ne.s32.totalorder %s44, %s47
      %p56 = scmp.eq.s32.totalorder %s20, 3
      %p57 = por %p55, %p56
      %p58 = scmp.ne.s32.totalorder %s47, %s48
      %p59 = scmp.eq.s32.totalorder %s20, 0
      %p60 = por %p58, %p59
      %p61 = scmp.ne.s32.totalorder %s47, %s48
      %p62 = scmp.eq.s32.totalorder %s21, 3
      %p63 = por %p61, %p62
      %p65 = scmp.ne.s32.totalorder %s48, %s64
      %p66 = scmp.eq.s32.totalorder %s21, 0
      %p67 = por %p65, %p66
      %s68 = ssub.s32 1, %s23
      %s69 = smul.u32 %s24, %s68
      %s70 = ssub.s32 1, %s37
      %s71 = smul.u32 %s33, %s70
      %s72 = ssub.s32 %s69, %s71
      %p73 = scmp.eq.s32.totalorder %s72, 0
      %s75 = sadd.s32 %s74, 1
      %s76 = scalar_select %p73, %s74, %s75
      %p79 = pneg %p73
      %p80 = scmp.eq.s32.totalorder %s15, 3
      %p81 = por %p79, %p80
      %p82 = scmp.ne.s32.totalorder %s74, %s77
      %p83 = scmp.eq.s32.totalorder %s15, 0
      %p84 = por %p82, %p83
      %p85 = scmp.ne.s32.totalorder %s74, %s77
      %p86 = scmp.eq.s32.totalorder %s20, 3
      %p87 = por %p85, %p86
      %p88 = scmp.ne.s32.totalorder %s77, %s78
      %p89 = scmp.eq.s32.totalorder %s20, 0
      %p90 = por %p88, %p89
      %p91 = scmp.ne.s32.totalorder %s77, %s78
      %p92 = scmp.eq.s32.totalorder %s21, 3
      %p93 = por %p91, %p92
      %p95 = scmp.ne.s32.totalorder %s78, %s94
      %p96 = scmp.eq.s32.totalorder %s21, 0
      %p97 = por %p95, %p96
      %s98 = ssub.s32 %s22, %s41
      %p99 = scmp.eq.s32.totalorder %s98, 0
      %s101 = sadd.s32 %s100, 1
      %s102 = scalar_select %p99, %s100, %s101
      %p105 = pneg %p99
      %p106 = scmp.eq.s32.totalorder %s15, 3
      %p107 = por %p105, %p106
      %p108 = scmp.ne.s32.totalorder %s100, %s103
      %p109 = scmp.eq.s32.totalorder %s15, 0
      %p110 = por %p108, %p109
      %p111 = scmp.ne.s32.totalorder %s100, %s103
      %p112 = scmp.eq.s32.totalorder %s20, 3
      %p113 = por %p111, %p112
      %p114 = scmp.ne.s32.totalorder %s103, %s104
      %p115 = scmp.eq.s32.totalorder %s20, 0
      %p116 = por %p114, %p115
      %p117 = scmp.ne.s32.totalorder %s103, %s104
      %p118 = scmp.eq.s32.totalorder %s21, 3
      %p119 = por %p117, %p118
      %p121 = scmp.ne.s32.totalorder %s104, %s120
      %p122 = scmp.eq.s32.totalorder %s21, 0
      %p123 = por %p121, %p122
      %s124 = ssub.s32 %s24, %s33
      %p125 = scmp.eq.s32.totalorder %s124, 0
      %s127 = sadd.s32 %s126, 1
      %s128 = scalar_select %p125, %s126, %s127
      %p131 = pneg %p125
      %p132 = scmp.eq.s32.totalorder %s15, 3
      %p133 = por %p131, %p132
      %p134 = scmp.ne.s32.totalorder %s126, %s129
      %p135 = scmp.eq.s32.totalorder %s15, 0
      %p136 = por %p134, %p135
      %p137 = scmp.ne.s32.totalorder %s126, %s129
      %p138 = scmp.eq.s32.totalorder %s20, 3
      %p139 = por %p137, %p138
      %p140 = scmp.ne.s32.totalorder %s129, %s130
      %p141 = scmp.eq.s32.totalorder %s20, 0
      %p142 = por %p140, %p141
      %p143 = scmp.ne.s32.totalorder %s129, %s130
      %p144 = scmp.eq.s32.totalorder %s21, 3
      %p145 = por %p143, %p144
      %p147 = scmp.ne.s32.totalorder %s130, %s146
      %p148 = scmp.eq.s32.totalorder %s21, 0
      %p149 = por %p147, %p148
      %s150 = ssub.s32 %s22, %s41
      %p151 = scmp.eq.s32.totalorder %s150, 0
      %s153 = sadd.s32 %s152, 1
      %s154 = scalar_select %p151, %s152, %s153
      %p157 = pneg %p151
      %p158 = scmp.eq.s32.totalorder %s15, 3
      %p159 = por %p157, %p158
      %p160 = scmp.ne.s32.totalorder %s152, %s155
      %p161 = scmp.eq.s32.totalorder %s15, 0
      %p162 = por %p160, %p161
      %p163 = scmp.ne.s32.totalorder %s152, %s155
      %p164 = scmp.eq.s32.totalorder %s20, 3
      %p165 = por %p163, %p164
      %p166 = scmp.ne.s32.totalorder %s155, %s156
      %p167 = scmp.eq.s32.totalorder %s20, 0
      %p168 = por %p166, %p167
      %p169 = scmp.ne.s32.totalorder %s155, %s156
      %p170 = scmp.eq.s32.totalorder %s21, 3
      %p171 = por %p169, %p170
      %p173 = scmp.ne.s32.totalorder %s156, %s172
      %p174 = scmp.eq.s32.totalorder %s21, 0
      %p175 = por %p173, %p174
      %s176 = ssub.s32 %s22, %s41
      %p177 = scmp.eq.s32.totalorder %s176, 0
      %s179 = sadd.s32 %s178, 1
      %s180 = scalar_select %p177, %s178, %s179
      %p183 = pneg %p177
      %p184 = scmp.eq.s32.totalorder %s15, 3
      %p185 = por %p183, %p184
      %p186 = scmp.ne.s32.totalorder %s178, %s181
      %p187 = scmp.eq.s32.totalorder %s15, 0
      %p188 = por %p186, %p187
      %p189 = scmp.ne.s32.totalorder %s178, %s181
      %p190 = scmp.eq.s32.totalorder %s20, 3
      %p191 = por %p189, %p190
      %p192 = scmp.ne.s32.totalorder %s181, %s182
      %p193 = scmp.eq.s32.totalorder %s20, 0
      %p194 = por %p192, %p193
      %p195 = scmp.ne.s32.totalorder %s181, %s182
      %p196 = scmp.eq.s32.totalorder %s21, 3
      %p197 = por %p195, %p196
      %p199 = scmp.ne.s32.totalorder %s182, %s198
      %p200 = scmp.eq.s32.totalorder %s21, 0
      %p201 = por %p199, %p200
      %p202 = scmp.le.s32.totalorder 1, %s15
      %p203 = scmp.lt.s32.totalorder %s15, 5
      %p204 = pnand %p202, %p203
      %p205 = pneg %p204
      // Predicated region
      $region9: #{tpu_custom_call.1} parent=5 // pred_check
        _
      $region10: #{tpu_custom_call.1} parent=5 // pred_check_branch
        %207 = sbr.rel (%p204) target = $region12
      $region11: #{tpu_custom_call.1} parent=5 // pred_region
        %s208 = ssub.s32 %s15, 1
        // Predicated region
        $region13: #{tpu_custom_call.1} parent=11 // pred_check
          %p209 = pneg %p142
        $region14: #{tpu_custom_call.1} parent=11 // pred_check_branch
          %211 = sbr.rel (%p209) target = $region16
        $region15: #{tpu_custom_call.1} parent=11 // pred_region
          %p212 = scmp.lt.s32.totalorder %s27, 0
          %s213 = scalar_select %p212, %s27, 0
          %s214 = scalar_lea.vmem %s3, %s213
        $region16: #{tpu_custom_call.1} parent=11 // pred_fallthru
          _
      $region12: #{tpu_custom_call.1} parent=5 // pred_fallthru
        _
      %p215 = scmp.lt.s32.totalorder %s15, 4
      // Predicated region
      $region17: #{tpu_custom_call.1} parent=5 // pred_check
        %p216 = pneg %p215
      $region18: #{tpu_custom_call.1} parent=5 // pred_check_branch
        %218 = sbr.rel (%p216) target = $region20
      $region19: #{tpu_custom_call.1} parent=5 // pred_region
        // Predicated region
        $region21: #{tpu_custom_call.1} parent=19 // pred_check
          %p219 = pneg %p54
        $region22: #{tpu_custom_call.1} parent=19 // pred_check_branch
          %221 = sbr.rel (%p219) target = $region24
        $region23: #{tpu_custom_call.1} parent=19 // pred_region
          %p222 = scmp.lt.s32.totalorder %s22, 1
          %s223 = scalar_select %p222, %s22, 1
          %s224 = smul.addr %s223, 8
          %s225 = scalar_lea.vmem %s0, %s224
        $region24: #{tpu_custom_call.1} parent=19 // pred_fallthru
          _
        // Predicated region
        $region25: #{tpu_custom_call.1} parent=19 // pred_check
          %p226 = pneg %p84
        $region26: #{tpu_custom_call.1} parent=19 // pred_check_branch
          %228 = sbr.rel (%p226) target = $region28
        $region27: #{tpu_custom_call.1} parent=19 // pred_region
          %s229 = sand.u32 %s74, 1
          %s230 = scalar_lea.sflag [#allocation8], %s229
          %s231 = sand.u32 %s74, 1
          %s232 = smul.addr %s231, 16
          %s233 = scalar_lea.vmem [#allocation7], %s232
          %s234 = ssub.s32 1, %s23
          %s235 = smul.u32 %s24, %s234
          %s236 = smul.u32 2, %s235
          %s238 = ssub.s32 256, 256
          %239 = vsyncadd %s230, %s238
          %s240 = smul.addr %s236, 128
          %s241 = scalar_lea.hbm %s1, %s240
          %s242 = sshll.u32 %s233, 4
          %s243 = int_to_ptr.vmem [resolvable:$true] %s242
          %248 = dma.hbm_to_vmem [thread:$0]  %s241, 256, %s243, %s230, 128, 128, 8
        $region28: #{tpu_custom_call.1} parent=19 // pred_fallthru
          _
        // Predicated region
        $region29: #{tpu_custom_call.1} parent=19 // pred_check
          %p249 = pneg %p110
        $region30: #{tpu_custom_call.1} parent=19 // pred_check_branch
          %251 = sbr.rel (%p249) target = $region32
        $region31: #{tpu_custom_call.1} parent=19 // pred_region
          %p252 = scmp.lt.s32.totalorder %s22, 1
          %s253 = scalar_select %p252, %s22, 1
          %s254 = smul.addr %s253, 8
          %s255 = scalar_lea.vmem %s2, %s254
        $region32: #{tpu_custom_call.1} parent=19 // pred_fallthru
          _
      $region20: #{tpu_custom_call.1} parent=5 // pred_fallthru
        _
      %p256 = scmp.le.s32.totalorder 1, %s15
      %p257 = scmp.lt.s32.totalorder %s15, 5
      %p258 = pnand %p256, %p257
      %p259 = pneg %p258
      // Predicated region
      $region33: #{tpu_custom_call.1} parent=5 // pred_check
        _
      $region34: #{tpu_custom_call.1} parent=5 // pred_check_branch
        %261 = sbr.rel (%p258) target = $region36
      $region35: #{tpu_custom_call.1} parent=5 // pred_region
        %s262 = ssub.s32 %s15, 1
        %s263 = sand.u32 %s77, 1
        %s264 = scalar_lea.sflag [#allocation8], %s263
        %s265 = sand.u32 %s77, 1
        %s266 = smul.addr %s265, 16
        %s267 = scalar_lea.vmem [#allocation7], %s266
        // Predicated region
        $region37: #{tpu_custom_call.1} parent=35 // pred_check
          %p268 = pneg %p90
        $region38: #{tpu_custom_call.1} parent=35 // pred_check_branch
          %270 = sbr.rel (%p268) target = $region40
        $region39: #{tpu_custom_call.1} parent=35 // pred_region
          %271 = dma.done %s264, 256
        $region40: #{tpu_custom_call.1} parent=35 // pred_fallthru
          _
        %p272 = scmp.lt.s32.totalorder %s25, 1
        %s273 = scalar_select %p272, %s25, 1
        %s274 = smul.addr %s273, 8
        %s275 = scalar_lea.vmem %s0, %s274
        %p276 = pneg %p60
        %p277 = pneg %p57
        %s278 = sand.u32 %s77, 1
        %s279 = scalar_lea.sflag [#allocation8], %s278
        %s280 = sand.u32 %s77, 1
        %s281 = smul.addr %s280, 16
        %s282 = scalar_lea.vmem [#allocation7], %s281
        %p283 = pneg %p90
        %p284 = pneg %p87
        %p285 = scmp.lt.s32.totalorder %s25, 1
        %s286 = scalar_select %p285, %s25, 1
        %s287 = smul.addr %s286, 8
        %s288 = scalar_lea.vmem %s2, %s287
        %p289 = pneg %p116
        %p290 = pneg %p113
        %p291 = scmp.lt.s32.totalorder %s27, 0
        %s292 = scalar_select %p291, %s27, 0
        %s293 = scalar_lea.vmem %s3, %s292
        %p294 = pneg %p142
        %p295 = pneg %p139
        %p296 = pneg %p168
        %p297 = pneg %p165
        %p298 = scmp.lt.s32.totalorder %s25, 1
        %s299 = scalar_select %p298, %s25, 1
        %s300 = smul.addr %s299, 8
        %s301 = scalar_lea.vmem %s4, %s300
        %p302 = pneg %p194
        %p303 = pneg %p191
        %p304 = scmp.lt.s32.totalorder %s25, 1
        %s305 = scalar_select %p304, %s25, 1
        %s306 = smul.addr %s305, 8
        %s307 = scalar_lea.vmem %s5, %s306
        %p308 = scmp.lt.s32.totalorder %s25, 1
        %s309 = scalar_select %p308, %s25, 1
        %s310 = smul.addr %s309, 8
        %s311 = scalar_lea.vmem %s0, %s310
        %s312 = ssub.s32 1, %s26
        %s313 = smul.u32 %s27, %s312
        %s314 = smul.u32 2, %s313
        %p315 = scmp.lt.s32.totalorder %s25, 1
        %s316 = scalar_select %p315, %s25, 1
        %s317 = smul.addr %s316, 8
        %s318 = scalar_lea.vmem %s2, %s317
        %p319 = scmp.lt.s32.totalorder %s27, 0
        %s320 = scalar_select %p319, %s27, 0
        %s321 = scalar_lea.vmem %s3, %s320
        %p322 = scmp.lt.s32.totalorder %s25, 1
        %s323 = scalar_select %p322, %s25, 1
        %s324 = smul.addr %s323, 8
        %s325 = scalar_lea.vmem %s4, %s324
        %p326 = scmp.lt.s32.totalorder %s25, 1
        %s327 = scalar_select %p326, %s25, 1
        %s328 = smul.addr %s327, 8
        %s329 = scalar_lea.vmem %s5, %s328
        %s330 = smul.u32 %s25, 8
        %v331 = vlaneseq
        %v332 = vshrl.u32 %v331, 7
        %v333 = vstv %s330
        %v334 = vadd.s32 %v333, %v332
        %s335 = smul.u32 %s27, 16
        %v336 = vlaneseq
        %v337 = vand.u32 %v336, 127
        %v338 = vstv %s335
        %v339 = vadd.s32 %v338, %v337
        %v340 = vld [vmem:[%s318] sm:$0xff]
        %v341 = vld [vmem:[%s321] sm:$0x1]
        %342 = vset.pattern.permute.xlu0 0
        %343 = vperm.xlu0 %342, %v340
        %v344 = vpop.permute.xlu0 %343
        %v345 = vlaneseq
        %v346 = vshrl.u32 %v345, 7
        %v347 = vsub.s32 0, %v346
        %v348 = vrot.slane %v341, %v347
        %vm349 = vcmp.eq.s32.totalorder %v344, %v348
        %vm350 = vcmp.eq.s32.totalorder %v340, 4294967295
        %vm351 = vcmp.lt.s32.totalorder %v339, 16
        %p352 = scmp.eq.s32.totalorder %s26, 0
        // Predicated region
        $region41: #{tpu_custom_call.1} parent=35 // pred_check
          %p353 = pneg %p352
        $region42: #{tpu_custom_call.1} parent=35 // pred_check_branch
          %355 = sbr.rel (%p353) target = $region44
        $region43: #{tpu_custom_call.1} parent=35 // pred_region
          %p356 = scmp.eq.s32.totalorder %s27, 0
          // Predicated region
          $region45: #{tpu_custom_call.1} parent=43 // pred_check
            %p357 = pneg %p356
          $region46: #{tpu_custom_call.1} parent=43 // pred_check_branch
            %359 = sbr.rel (%p357) target = $region48
          $region47: #{tpu_custom_call.1} parent=43 // pred_region
            %vm360 = vcmask 7168
            %361 = vst.msk [vmem:[#allocation2] sm:$0xff] %vm360, -inf
            %362 = vst.msk [vmem:[#allocation3] sm:$0xff] %vm360, 0.0
          $region48: #{tpu_custom_call.1} parent=43 // pred_fallthru
            _
          %v363 = vld [vmem:[%s311] sm:$0xff]
          %v364 = vld [vmem:[%s267] sm:$0xff]
          %v365 = vld [vmem:[%s267 + $0x8] sm:$0xff]
          %vm366 = vcmask 261120
          %v368 = vsel %vm366, %v363, 0
          %v371 = vsel %vm366, %v364, 0
          %v374 = vsel %vm366, %v365, 0
          %376 = vmatprep.subr.mxu0 0.0
          %377 = vmatpush1.xpose.msra.mxu0 0.0
          %378 = vmatprep.subr.mxu0 0.0
          %379 = vmatpush1.xpose.msra.mxu0 0.0
          %380 = vmatprep.subr.mxu0 0.0
          %381 = vmatpush1.xpose.msra.mxu0 0.0
          %382 = vmatprep.subr.mxu0 0.0
          %383 = vmatpush1.xpose.msra.mxu0 0.0
          %384 = vmatprep.subr.mxu0 0.0
          %385 = vmatpush1.xpose.msra.mxu0 0.0
          %386 = vmatprep.subr.mxu0 0.0
          %387 = vmatpush1.xpose.msra.mxu0 0.0
          %388 = vmatprep.subr.mxu0 0.0
          %389 = vmatpush1.xpose.msra.mxu0 0.0
          %390 = vmatprep.subr.mxu0 0.0
          %391 = vmatpush1.xpose.msra.mxu0 0.0
          %392 = vmatprep.subr.mxu0 0.0
          %393 = vmatpush1.xpose.msra.mxu0 0.0
          %394 = vmatprep.subr.mxu0 0.0
          %395 = vmatpush1.xpose.msra.mxu0 0.0
          %396 = vmatprep.subr.mxu0 0.0
          %397 = vmatpush1.xpose.msra.mxu0 0.0
          %398 = vmatprep.subr.mxu0 0.0
          %399 = vmatpush1.xpose.msra.mxu0 0.0
          %400 = vmatprep.subr.mxu0 0.0
          %401 = vmatpush1.xpose.msra.mxu0 0.0
          %402 = vmatprep.subr.mxu0 0.0
          %403 = vmatpush1.xpose.msra.mxu0 0.0
          %404 = vmatprep.subr.mxu0 0.0
          %405 = vmatpush1.xpose.msra.mxu0 %v374
          %406 = vmatprep.subr.mxu0 0.0
          %407 = vmatpush1.xpose.msra.mxu0 %v371
          %408 = vmatprep.subr.mxu0 0.0
          %409 = vmatpush2.xpose.msra.mxu0 0.0
          %410 = vmatprep.subr.mxu0 0.0
          %411 = vmatpush2.xpose.msra.mxu0 0.0
          %412 = vmatprep.subr.mxu0 0.0
          %413 = vmatpush2.xpose.msra.mxu0 0.0
          %414 = vmatprep.subr.mxu0 0.0
          %415 = vmatpush2.xpose.msra.mxu0 0.0
          %416 = vmatprep.subr.mxu0 0.0
          %417 = vmatpush2.xpose.msra.mxu0 0.0
          %418 = vmatprep.subr.mxu0 0.0
          %419 = vmatpush2.xpose.msra.mxu0 0.0
          %420 = vmatprep.subr.mxu0 0.0
          %421 = vmatpush2.xpose.msra.mxu0 0.0
          %422 = vmatprep.subr.mxu0 0.0
          %423 = vmatpush2.xpose.msra.mxu0 0.0
          %424 = vmatprep.subr.mxu0 0.0
          %425 = vmatpush2.xpose.msra.mxu0 0.0
          %426 = vmatprep.subr.mxu0 0.0
          %427 = vmatpush2.xpose.msra.mxu0 0.0
          %428 = vmatprep.subr.mxu0 0.0
          %429 = vmatpush2.xpose.msra.mxu0 0.0
          %430 = vmatprep.subr.mxu0 0.0
          %431 = vmatpush2.xpose.msra.mxu0 0.0
          %432 = vmatprep.subr.mxu0 0.0
          %433 = vmatpush2.xpose.msra.mxu0 0.0
          %434 = vmatprep.subr.mxu0 0.0
          %435 = vmatpush2.xpose.msra.mxu0 0.0
          %436 = vmatprep.subr.mxu0 0.0
          %437 = vmatpush2.xpose.msra.mxu0 0.0
          %438 = vmatprep.subr.mxu0 0.0
          %439 = vmatpush2.xpose.msra.mxu0 0.0
          %440 = vmatprep.mubr.f32.mxu0 0.0
          %441 = vmatmul.mubr.f32.gmra.mxu0 %v368
          %v442 = vpop.f32.mrf.mxu0
          %v443 = vadd.f32 0.0, %v442
          %v444 = vpop.f32.mrf.mxu0
          %445 = vdwg.mxu0
          %v446 = vmul.f32 %v443, 100.0
          %s447 = smul.u32 %s27, 8
          %s448 = scalar_lea.vmem [#allocation6], %s447
          %vm449 = vcmask 130048
          %450 = vst.msk [vmem:[%s448] sm:$0xff] %vm449, %v446
          %v451 = vsel %vm351, 1, 0
          %vm452 = vcmp.eq.s32.totalorder %v451, 1
          %v453 = vsel %vm452, %v446, -inf
          %v454 = vld [vmem:[#allocation2] sm:$0xff]
          %v455 = vsel %vm449, %v453, -inf
          %456 = vmax.xlane.f32.xlu0 %v455
          %v457 = vpop.xlane.xlu0 %456
          %v458 = vmax.f32 %v454, %v457
          %460 = vset.pattern.permute.xlu0 0
          %461 = vperm.xlu0 %460, %v458
          %v462 = vpop.permute.xlu0 %461
          %v464 = vsub.f32 %v453, %v462
          %v465 = vmul.f32 %v464, 1.442695
          %v466 = vpow.pop %v465
          %v467 = vsel %vm349, 0.0, %v466
          %v468 = vsel %vm449, %v467, 0.0
          %469 = vadd.xlane.f32.xlu0 %v468
          %v470 = vpop.xlane.xlu0 %469
          %v471 = vld [vmem:[#allocation3] sm:$0xff]
          %v472 = vsub.f32 %v454, %v458
          %v473 = vmul.f32 %v472, 1.442695
          %v474 = vpow.pop %v473
          %v475 = vmul.f32 %v471, %v474
          %v476 = vadd.f32 %v475, %v470
          %vm477 = vcmask 7168
          %478 = vst.msk [vmem:[#allocation3] sm:$0xff] %vm477, %v476
          %479 = vst.msk [vmem:[#allocation2] sm:$0xff] %vm477, %v458
        $region44: #{tpu_custom_call.1} parent=35 // pred_fallthru
          _
        %p480 = scmp.eq.s32.totalorder %s26, 1
        // Predicated region
        $region49: #{tpu_custom_call.1} parent=35 // pred_check
          %p481 = pneg %p480
        $region50: #{tpu_custom_call.1} parent=35 // pred_check_branch
          %483 = sbr.rel (%p481) target = $region52
        $region51: #{tpu_custom_call.1} parent=35 // pred_region
          %p484 = scmp.eq.s32.totalorder %s27, 0
          // Predicated region
          $region53: #{tpu_custom_call.1} parent=51 // pred_check
            %p485 = pneg %p484
          $region54: #{tpu_custom_call.1} parent=51 // pred_check_branch
            %487 = sbr.rel (%p485) target = $region56
          $region55: #{tpu_custom_call.1} parent=51 // pred_region
            %vm488 = vcmask 7168
            %489 = vst.msk [vmem:[#allocation4] sm:$0xff] %vm488, 0.0
            %490 = vst.msk [vmem:[#allocation5] sm:$0xff] %vm488, 0.0
          $region56: #{tpu_custom_call.1} parent=51 // pred_fallthru
            _
          %s491 = smul.u32 %s27, 8
          %s492 = scalar_lea.vmem [#allocation6], %s491
          %v493 = vld [vmem:[%s492] sm:$0xff]
          %v494 = vld [vmem:[#allocation2] sm:$0xff]
          %496 = vset.pattern.permute.xlu0 0
          %497 = vperm.xlu0 %496, %v494
          %v498 = vpop.permute.xlu0 %497
          %v500 = vsub.f32 %v493, %v498
          %v501 = vld [vmem:[#allocation3] sm:$0xff]
          %v502 = vmul.f32 %v500, 1.442695
          %v503 = vpow.pop %v502
          %505 = vset.pattern.permute.xlu0 0
          %506 = vperm.xlu0 %505, %v501
          %v507 = vpop.permute.xlu0 %506
          %v509 = vadd.f32 %v507, %v503
          %v510 = vlog2.pop %v509
          %v511 = vmul.f32 %v510, 0.6931472
          %v512 = vsub.f32 %v500, %v511
          %vm513 = vcmp.ne.s32.totalorder %v334, %v339
          %v514 = vsel %vm351, 1, 0
          %vm515 = vcmp.eq.s32.totalorder %v514, 1
          %vm516 = vmand %vm515, %vm513
          %vm517 = vmand %vm349, %vm516
          %v518 = vld [vmem:[#allocation4] sm:$0xff]
          %v519 = vsel %vm517, 1, 0
          %v520 = vcvt.s32.f32 %v519
          %vm521 = vcmask 130048
          %v522 = vsel %vm521, %v520, 0.0
          %523 = vadd.xlane.f32.xlu0 %v522
          %v524 = vpop.xlane.xlu0 %523
          %v525 = vadd.f32 %v518, %v524
          %vm526 = vcmask 7168
          %527 = vst.msk [vmem:[#allocation4] sm:$0xff] %vm526, %v525
          %v528 = vld [vmem:[#allocation5] sm:$0xff]
          %v529 = vsel %vm517, %v512, 0.0
          %v530 = vsel %vm521, %v529, 0.0
          %531 = vadd.xlane.f32.xlu0 %v530
          %v532 = vpop.xlane.xlu0 %531
          %v533 = vadd.f32 %v528, %v532
          %534 = vst.msk [vmem:[#allocation5] sm:$0xff] %vm526, %v533
          // Predicated region
          $region57: #{tpu_custom_call.1} parent=51 // pred_check
            %p535 = pneg %p484
          $region58: #{tpu_custom_call.1} parent=51 // pred_check_branch
            %537 = sbr.rel (%p535) target = $region60
          $region59: #{tpu_custom_call.1} parent=51 // pred_region
            %v538 = vld [vmem:[#allocation4] sm:$0xff]
            %vm539 = vcmp.gt.f32.partialorder %v538, 0.0
            %vm540 = vmxor %vm350, 1
            %vm541 = vcmp.lt.s32.totalorder %v334, 16
            %vm542 = vmand %vm540, %vm541
            %vm543 = vmand %vm539, %vm542
            %v544 = vld [vmem:[#allocation5] sm:$0xff]
            %v545 = vsel %vm543, 0.0, 1.0
            %v546 = vadd.f32 %v538, %v545
            %v547 = vrcp.pop %v546
            %v548 = vmul.f32 %v544, %v547
            %v549 = vsel %vm543, %v548, 0.0
            %550 = vst.msk [vmem:[%s325] sm:$0xff] %vm526, %v549
            %v551 = vsel %vm543, 1, 0
            %v552 = vcvt.s32.f32 %v551
            %553 = vst.msk [vmem:[%s329] sm:$0xff] %vm526, %v552
          $region60: #{tpu_custom_call.1} parent=51 // pred_fallthru
            _
        $region52: #{tpu_custom_call.1} parent=35 // pred_fallthru
          _
        %p554 = scmp.lt.s32.totalorder %s25, 1
        %s555 = scalar_select %p554, %s25, 1
        %s556 = smul.addr %s555, 8
        %s557 = scalar_lea.vmem %s4, %s556
        %p558 = scmp.lt.s32.totalorder %s25, 1
        %s559 = scalar_select %p558, %s25, 1
        %s560 = smul.addr %s559, 8
        %s561 = scalar_lea.vmem %s5, %s560
        // Predicated region
        $region61: #{tpu_custom_call.1} parent=35 // pred_check
          %p562 = pneg %p165
        $region62: #{tpu_custom_call.1} parent=35 // pred_check_branch
          %564 = sbr.rel (%p562) target = $region64
        $region63: #{tpu_custom_call.1} parent=35 // pred_region
          _
        $region64: #{tpu_custom_call.1} parent=35 // pred_fallthru
          _
        // Predicated region
        $region65: #{tpu_custom_call.1} parent=35 // pred_check
          %p565 = pneg %p191
        $region66: #{tpu_custom_call.1} parent=35 // pred_check_branch
          %567 = sbr.rel (%p565) target = $region68
        $region67: #{tpu_custom_call.1} parent=35 // pred_region
          _
        $region68: #{tpu_custom_call.1} parent=35 // pred_fallthru
          _
      $region36: #{tpu_custom_call.1} parent=5 // pred_fallthru
        _
      %p568 = scmp.le.s32.totalorder 2, %s15
      // Predicated region
      $region69: #{tpu_custom_call.1} parent=5 // pred_check
        %p569 = pneg %p568
      $region70: #{tpu_custom_call.1} parent=5 // pred_check_branch
        %571 = sbr.rel (%p569) target = $region72
      $region71: #{tpu_custom_call.1} parent=5 // pred_region
        %s572 = ssub.s32 %s15, 2
        // Predicated region
        $region73: #{tpu_custom_call.1} parent=71 // pred_check
          %p573 = pneg %p171
        $region74: #{tpu_custom_call.1} parent=71 // pred_check_branch
          %575 = sbr.rel (%p573) target = $region76
        $region75: #{tpu_custom_call.1} parent=71 // pred_region
          %p576 = scmp.lt.s32.totalorder %s28, 1
          %s577 = scalar_select %p576, %s28, 1
          %s578 = smul.addr %s577, 8
          %s579 = scalar_lea.vmem %s4, %s578
        $region76: #{tpu_custom_call.1} parent=71 // pred_fallthru
          _
        // Predicated region
        $region77: #{tpu_custom_call.1} parent=71 // pred_check
          %p580 = pneg %p197
        $region78: #{tpu_custom_call.1} parent=71 // pred_check_branch
          %582 = sbr.rel (%p580) target = $region80
        $region79: #{tpu_custom_call.1} parent=71 // pred_region
          %p583 = scmp.lt.s32.totalorder %s28, 1
          %s584 = scalar_select %p583, %s28, 1
          %s585 = smul.addr %s584, 8
          %s586 = scalar_lea.vmem %s5, %s585
        $region80: #{tpu_custom_call.1} parent=71 // pred_fallthru
          _
      $region72: #{tpu_custom_call.1} parent=5 // pred_fallthru
        _
    $region6: #{tpu_custom_call.1} parent=1 // loop_footer
      %s19 = sadd.s32 1, %s15
    $region7: #{tpu_custom_call.1} parent=1 // loop_footer_branch
      %14 = sbr.rel target = $region3
    $region8: #{tpu_custom_call.1} parent=1 // loop_exit
      _
    %587 = vsyncpa [#allocation8], 1
    %s588 = scalar_lea.sflag [#allocation8], 1
    %589 = vsyncpa %s588, 1

</llo_original>
